<compile_context>
chip_gen: v7x
topology: tpu7x:2x2x1
jax: 0.10.0
libtpu: 0.0.40
codegen_flags: <defaults>
</compile_context>

<pallas_src>
import functools

import jax
import jax.numpy as jnp
from jax import lax
from jax.experimental import pallas as pl
from jax.experimental.pallas import tpu as pltpu


TEMPERATURE = 0.07
COS_EPS = 1e-8  # torch.nn.CosineSimilarity default eps


def _class_consistency_kernel(feat_ref, lab_ref, mu_ref, out_ref,
                              cs_acc, cnt_acc, *,
                              inv_temperature, eps, inv_batch, n_classes):
    step = pl.program_id(0)

    @pl.when(step == 0)
    def _init():
        cs_acc[...] = jnp.zeros_like(cs_acc)
        cnt_acc[...] = jnp.zeros_like(cnt_acc)

    f = feat_ref[...].astype(jnp.float32)                  # [TB, C]
    mu = mu_ref[...].astype(jnp.float32)                   # [NCLS, C]
    lab = lab_ref[...]                                     # [TB, 1] int32
    tb = f.shape[0]

    # One-hot over classes (rows = samples on sublanes, cols = classes on lanes).
    class_iota = lax.broadcasted_iota(jnp.int32, (tb, n_classes), 1)
    onehot = (lab == class_iota).astype(jnp.float32)       # [TB, NCLS]

    # Gather per-sample class means on the MXU (exact: one-hot row selection).
    cm = jnp.dot(onehot, mu, preferred_element_type=jnp.float32,
                 precision=lax.Precision.HIGHEST)          # [TB, C]

    # Cosine similarity along channels; rsqrt form is exact w.r.t.
    # dot / max(sqrt(sf*sm), eps) == dot * rsqrt(max(sf*sm, eps^2)).
    dot_fm = jnp.sum(f * cm, axis=-1, keepdims=True)       # [TB, 1]
    sf = jnp.sum(f * f, axis=-1, keepdims=True)            # [TB, 1]
    sm = jnp.sum(cm * cm, axis=-1, keepdims=True)          # [TB, 1]
    cos = dot_fm * lax.rsqrt(jnp.maximum(sf * sm, eps * eps))
    e = jnp.exp(cos * inv_temperature)                     # [TB, 1]

    # Accumulate per-class exp-sums and sample counts across B tiles.
    cs_acc[...] += jnp.sum(onehot * e, axis=0, keepdims=True)    # [1, NCLS]
    cnt_acc[...] += jnp.sum(onehot, axis=0, keepdims=True)       # [1, NCLS]

    @pl.when(step == pl.num_programs(0) - 1)
    def _finalize():
        cs = cs_acc[...]                                   # per-class sum of exp(sim)
        cnt = cnt_acc[...]                                 # per-class sample count
        total = jnp.sum(cs)
        # -log(pos/neg) = log(neg) - log(pos); identical for every sample of a class.
        term = jnp.where(cnt > 0.0, jnp.log(total - cs) - jnp.log(cs), 0.0)
        loss = jnp.sum(cnt * term) * inv_batch
        out_ref[...] = jnp.reshape(loss, (1, 1))


def _pick_block(batch, target):
    """Largest B-tile <= target that divides B and is a multiple of 8 (or B itself)."""
    if batch <= target:
        return batch
    for tb in range(min(target, batch), 7, -1):
        if batch % tb == 0 and tb % 8 == 0:
            return tb
    return batch


def class_consistency_loss(features, labels, mu,
                           temperature=TEMPERATURE, eps=COS_EPS, block_b=512):
    """features: [B, C], labels: [B] int, mu: [n_classes, C] -> scalar loss."""
    B, C = features.shape
    ncls = mu.shape[0]
    tb = _pick_block(B, block_b)
    labels2d = labels.reshape(B, 1).astype(jnp.int32)

    kernel = functools.partial(
        _class_consistency_kernel,
        inv_temperature=float(1.0 / temperature),
        eps=float(eps),
        inv_batch=float(1.0 / B),
        n_classes=ncls)

    out = pl.pallas_call(
        kernel,
        grid=(B // tb,),
        in_specs=[
            pl.BlockSpec((tb, C), lambda i: (i, 0)),      # features tile
            pl.BlockSpec((tb, 1), lambda i: (i, 0)),      # labels tile (column)
            pl.BlockSpec((ncls, C), lambda i: (0, 0)),    # mu (small, resident)
        ],
        out_specs=pl.BlockSpec((1, 1), lambda i: (0, 0)),
        out_shape=jax.ShapeDtypeStruct((1, 1), jnp.float32),
        scratch_shapes=[
            pltpu.VMEM((1, ncls), jnp.float32),   # class sums of exp(sim)
            pltpu.VMEM((1, ncls), jnp.float32),   # class counts
        ],
        compiler_params=pltpu.CompilerParams(
            dimension_semantics=("arbitrary",)),  # B axis carries the accumulators
    )(features, labels2d, mu)
    return out[0, 0]


def class_consistency_ref(features, labels, mu,
                          temperature=TEMPERATURE, eps=COS_EPS):
    """Pure-JAX reference mirroring the PyTorch forward exactly."""
    f = features.astype(jnp.float32)
    cm = mu[labels].astype(jnp.float32)
    dot = jnp.sum(f * cm, axis=-1)
    denom = jnp.maximum(
        jnp.linalg.norm(f, axis=-1) * jnp.linalg.norm(cm, axis=-1), eps)
    sim = dot / denom / temperature
    e = jnp.exp(sim)
    mask = (labels[:, None] == labels[None, :]).astype(jnp.float32)
    pos = jnp.sum(e[None, :] * mask, axis=1)
    neg = jnp.sum(e[None, :] * (1.0 - mask), axis=1)
    return jnp.mean(-jnp.log(pos / neg))


if __name__ == "__main__":
    # Small deterministic setup; block_b=16 forces a 4-step grid so the
    # tiled accumulation path (init / accumulate / finalize) is exercised.
    B, C, NCLS = 64, 128, 4
    key = jax.random.PRNGKey(0)
    k_feat, k_mu, k_lab = jax.random.split(key, 3)

    features = jax.random.normal(k_feat, (B, C), dtype=jnp.float32)
    mu = jax.random.normal(k_mu, (NCLS, C), dtype=jnp.float32)  # class means
    labels = jax.random.randint(k_lab, (B,), 0, NCLS, dtype=jnp.int32)
    # TODO(synk): self.sigma / CrossEntropyLoss / MultivariateNormal are unused
    # in the reference forward(), so they are intentionally not modeled.

    loss = class_consistency_loss(features, labels, mu, block_b=16)
    loss = jax.block_until_ready(loss)

    ref = class_consistency_ref(features, labels, mu)
    assert jnp.allclose(loss, ref, rtol=1e-4, atol=1e-4), (loss, ref)

    print("KERNEL_OK")
</pallas_src>

<mosaic_0001>
module attributes {stable_mosaic.version = 11 : i64} {
  func.func @_class_consistency_kernel(%arg0: i32, %arg1: memref<16x128xf32, #tpu.memory_space<vmem>>, %arg2: memref<16x1xi32, #tpu.memory_space<vmem>>, %arg3: memref<4x128xf32, #tpu.memory_space<vmem>>, %arg4: memref<1x1xf32, #tpu.memory_space<vmem>>, %arg5: memref<1x4xf32, #tpu.memory_space<vmem>>, %arg6: memref<1x4xf32, #tpu.memory_space<vmem>>) attributes {dimension_semantics = [#tpu.dimension_semantics<arbitrary>], iteration_bounds = array<i64: 4>, scalar_prefetch = 0 : i64, scratch_operands = 2 : i64, tpu.core_type = #tpu.core_type<tc>, window_params = [{transform_indices = @transform_0, window_bounds = array<i64: 16, 128>}, {transform_indices = @transform_1, window_bounds = array<i64: 16, 1>}, {pipeline_mode = #tpu.pipeline_mode<synchronous>, transform_indices = @transform_2, window_bounds = array<i64: 4, 128>}, {pipeline_mode = #tpu.pipeline_mode<synchronous>, transform_indices = @transform_3, window_bounds = array<i64: 1, 1>}]} {
    %c0_i32 = arith.constant 0 : i32
    %0 = arith.cmpi eq, %arg0, %c0_i32 : i32
    %1 = arith.extui %0 : i1 to i32
    %c0_i32_0 = arith.constant 0 : i32
    %2 = arith.cmpi ne, %1, %c0_i32_0 : i32
    scf.if %2 {
      %cst_22 = arith.constant 0.000000e+00 : f32
      %44 = vector.broadcast %cst_22 : f32 to vector<1x4xf32>
      %c0_23 = arith.constant 0 : index
      %c0_24 = arith.constant 0 : index
      %45 = vector.load %arg5[%c0_23, %c0_24] : memref<1x4xf32, #tpu.memory_space<vmem>>, vector<1x4xf32>
      tpu.vector_store %arg5[%c0_23, %c0_24], %44 {strides = array<i32>} : memref<1x4xf32, #tpu.memory_space<vmem>>, vector<1x4xf32>,
      %cst_25 = arith.constant 0.000000e+00 : f32
      %46 = vector.broadcast %cst_25 : f32 to vector<1x4xf32>
      %c0_26 = arith.constant 0 : index
      %c0_27 = arith.constant 0 : index
      %47 = vector.load %arg6[%c0_26, %c0_27] : memref<1x4xf32, #tpu.memory_space<vmem>>, vector<1x4xf32>
      tpu.vector_store %arg6[%c0_26, %c0_27], %46 {strides = array<i32>} : memref<1x4xf32, #tpu.memory_space<vmem>>, vector<1x4xf32>,
    } else {
    }
    %c0 = arith.constant 0 : index
    %c0_1 = arith.constant 0 : index
    %3 = vector.load %arg1[%c0, %c0_1] : memref<16x128xf32, #tpu.memory_space<vmem>>, vector<16x128xf32>
    %c0_2 = arith.constant 0 : index
    %c0_3 = arith.constant 0 : index
    %4 = vector.load %arg3[%c0_2, %c0_3] : memref<4x128xf32, #tpu.memory_space<vmem>>, vector<4x128xf32>
    %c0_4 = arith.constant 0 : index
    %c0_5 = arith.constant 0 : index
    %5 = vector.load %arg2[%c0_4, %c0_5] : memref<16x1xi32, #tpu.memory_space<vmem>>, vector<16x1xi32>
    %6 = tpu.iota {dimensions = array<i32: 1>} : vector<16x4xi32>
    %7 = vector.broadcast %5 : vector<16x1xi32> to vector<16x4xi32>
    %8 = arith.cmpi eq, %7, %6 : vector<16x4xi32>
    %9 = arith.extui %8 : vector<16x4xi1> to vector<16x4xi32>
    %10 = arith.sitofp %9 : vector<16x4xi32> to vector<16x4xf32>
    %cst = arith.constant dense<0.000000e+00> : vector<16x128xf32>
    %11 = tpu.matmul %10, %4, %cst {dimension_numbers = #tpu.dot_dimension_numbers<[1], [0], [0], [1], [0, 0, 1, 1], [], []>, precision = #tpu.contract_precision<fp32>} : vector<16x4xf32>, vector<4x128xf32>, vector<16x128xf32> -> vector<16x128xf32>
    %12 = arith.mulf %3, %11 : vector<16x128xf32>
    %cst_6 = arith.constant dense<0.000000e+00> : vector<16xf32>
    %13 = vector.multi_reduction <add>, %12, %cst_6 [1] : vector<16x128xf32> to vector<16xf32>
    %14 = vector.shape_cast %13 : vector<16xf32> to vector<16x1xf32>
    %15 = arith.mulf %3, %3 : vector<16x128xf32>
    %cst_7 = arith.constant dense<0.000000e+00> : vector<16xf32>
    %16 = vector.multi_reduction <add>, %15, %cst_7 [1] : vector<16x128xf32> to vector<16xf32>
    %17 = vector.shape_cast %16 : vector<16xf32> to vector<16x1xf32>
    %18 = arith.mulf %11, %11 : vector<16x128xf32>
    %cst_8 = arith.constant dense<0.000000e+00> : vector<16xf32>
    %19 = vector.multi_reduction <add>, %18, %cst_8 [1] : vector<16x128xf32> to vector<16xf32>
    %20 = vector.shape_cast %19 : vector<16xf32> to vector<16x1xf32>
    %21 = arith.mulf %17, %20 : vector<16x1xf32>
    %cst_9 = arith.constant 1.000000e-16 : f32
    %22 = vector.broadcast %cst_9 : f32 to vector<16x1xf32>
    %23 = arith.maximumf %21, %22 : vector<16x1xf32>
    %24 = math.rsqrt %23 : vector<16x1xf32>
    %25 = arith.mulf %14, %24 : vector<16x1xf32>
    %cst_10 = arith.constant 14.2857141 : f32
    %26 = vector.broadcast %cst_10 : f32 to vector<16x1xf32>
    %27 = arith.mulf %25, %26 : vector<16x1xf32>
    %28 = math.exp %27 : vector<16x1xf32>
    %c0_11 = arith.constant 0 : index
    %c0_12 = arith.constant 0 : index
    %29 = vector.load %arg5[%c0_11, %c0_12] : memref<1x4xf32, #tpu.memory_space<vmem>>, vector<1x4xf32>
    %30 = vector.broadcast %28 : vector<16x1xf32> to vector<16x4xf32>
    %31 = arith.mulf %10, %30 : vector<16x4xf32>
    %cst_13 = arith.constant dense<0.000000e+00> : vector<4xf32>
    %32 = vector.multi_reduction <add>, %31, %cst_13 [0] : vector<16x4xf32> to vector<4xf32>
    %33 = vector.shape_cast %32 : vector<4xf32> to vector<1x4xf32>
    %34 = arith.addf %29, %33 : vector<1x4xf32>
    %c0_14 = arith.constant 0 : index
    %c0_15 = arith.constant 0 : index
    %35 = vector.load %arg5[%c0_14, %c0_15] : memref<1x4xf32, #tpu.memory_space<vmem>>, vector<1x4xf32>
    tpu.vector_store %arg5[%c0_14, %c0_15], %34 {strides = array<i32>} : memref<1x4xf32, #tpu.memory_space<vmem>>, vector<1x4xf32>,
    %c0_16 = arith.constant 0 : index
    %c0_17 = arith.constant 0 : index
    %36 = vector.load %arg6[%c0_16, %c0_17] : memref<1x4xf32, #tpu.memory_space<vmem>>, vector<1x4xf32>
    %cst_18 = arith.constant dense<0.000000e+00> : vector<4xf32>
    %37 = vector.multi_reduction <add>, %10, %cst_18 [0] : vector<16x4xf32> to vector<4xf32>
    %38 = vector.shape_cast %37 : vector<4xf32> to vector<1x4xf32>
    %39 = arith.addf %36, %38 : vector<1x4xf32>
    %c0_19 = arith.constant 0 : index
    %c0_20 = arith.constant 0 : index
    %40 = vector.load %arg6[%c0_19, %c0_20] : memref<1x4xf32, #tpu.memory_space<vmem>>, vector<1x4xf32>
    tpu.vector_store %arg6[%c0_19, %c0_20], %39 {strides = array<i32>} : memref<1x4xf32, #tpu.memory_space<vmem>>, vector<1x4xf32>,
    %c3_i32 = arith.constant 3 : i32
    %41 = arith.cmpi eq, %arg0, %c3_i32 : i32
    %42 = arith.extui %41 : i1 to i32
    %c0_i32_21 = arith.constant 0 : i32
    %43 = arith.cmpi ne, %42, %c0_i32_21 : i32
    scf.if %43 {
      %c0_22 = arith.constant 0 : index
      %c0_23 = arith.constant 0 : index
      %44 = vector.load %arg5[%c0_22, %c0_23] : memref<1x4xf32, #tpu.memory_space<vmem>>, vector<1x4xf32>
      %c0_24 = arith.constant 0 : index
      %c0_25 = arith.constant 0 : index
      %45 = vector.load %arg6[%c0_24, %c0_25] : memref<1x4xf32, #tpu.memory_space<vmem>>, vector<1x4xf32>
      %46 = vector.shape_cast %44 : vector<1x4xf32> to vector<1x1x4xf32>
      %cst_26 = arith.constant dense<0.000000e+00> : vector<1xf32>
      %47 = vector.multi_reduction <add>, %46, %cst_26 [1, 2] : vector<1x1x4xf32> to vector<1xf32>
      %48 = vector.shape_cast %47 : vector<1xf32> to vector<1x1x1xf32>
      %49 = vector.extract %48[0, 0, 0] : f32 from vector<1x1x1xf32>
      %cst_27 = arith.constant 0.000000e+00 : f32
      %50 = vector.broadcast %cst_27 : f32 to vector<1x4xf32>
      %51 = arith.cmpf ogt, %45, %50 : vector<1x4xf32>
      %52 = vector.broadcast %49 : f32 to vector<1x4xf32>
      %53 = arith.subf %52, %44 : vector<1x4xf32>
      %54 = math.log %53 : vector<1x4xf32>
      %55 = math.log %44 : vector<1x4xf32>
      %56 = arith.subf %54, %55 : vector<1x4xf32>
      %cst_28 = arith.constant 0.000000e+00 : f32
      %57 = vector.broadcast %cst_28 : f32 to vector<1x4xf32>
      %58 = arith.select %51, %56, %57 : vector<1x4xi1>, vector<1x4xf32>
      %59 = arith.mulf %45, %58 : vector<1x4xf32>
      %60 = vector.shape_cast %59 : vector<1x4xf32> to vector<1x1x4xf32>
      %cst_29 = arith.constant dense<0.000000e+00> : vector<1xf32>
      %61 = vector.multi_reduction <add>, %60, %cst_29 [1, 2] : vector<1x1x4xf32> to vector<1xf32>
      %62 = vector.shape_cast %61 : vector<1xf32> to vector<1x1x1xf32>
      %63 = vector.extract %62[0, 0, 0] : f32 from vector<1x1x1xf32>
      %cst_30 = arith.constant 1.562500e-02 : f32
      %64 = arith.mulf %63, %cst_30 : f32
      %65 = vector.broadcast %64 : f32 to vector<1x1xf32>
      %c0_31 = arith.constant 0 : index
      %c0_32 = arith.constant 0 : index
      %66 = vector.load %arg4[%c0_31, %c0_32] : memref<1x1xf32, #tpu.memory_space<vmem>>, vector<1x1xf32>
      tpu.vector_store %arg4[%c0_31, %c0_32], %65 {strides = array<i32>} : memref<1x1xf32, #tpu.memory_space<vmem>>, vector<1x1xf32>,
    } else {
    }
    return
  }
  func.func @transform_0(%arg0: i32) -> (i32, i32) {
    %c0_i32 = arith.constant 0 : i32
    %c0_i32_0 = arith.constant 0 : i32
    return %arg0, %c0_i32 : i32, i32
  }
  func.func @transform_1(%arg0: i32) -> (i32, i32) {
    %c0_i32 = arith.constant 0 : i32
    %c0_i32_0 = arith.constant 0 : i32
    return %arg0, %c0_i32 : i32, i32
  }
  func.func @transform_2(%arg0: i32) -> (i32, i32) {
    %c0_i32 = arith.constant 0 : i32
    %c0_i32_0 = arith.constant 0 : i32
    %c0_i32_1 = arith.constant 0 : i32
    return %c0_i32, %c0_i32_0 : i32, i32
  }
  func.func @transform_3(%arg0: i32) -> (i32, i32) {
    %c0_i32 = arith.constant 0 : i32
    %c0_i32_0 = arith.constant 0 : i32
    %c0_i32_1 = arith.constant 0 : i32
    return %c0_i32, %c0_i32_0 : i32, i32
  }
}

</mosaic_0001>

<llo_original>
// kernel: tpu_custom_call.1
$region0: #{tpu_custom_call.1}
  #allocation0 [shape = 'u32[]', space=smem, size = 0x4, offset = 0x4, fixed_abs, tag = 'smem constant byte address 0x4 - core index']
  #allocation1 [shape = 'u32[144,128]{1,0:T(1,128)}', space=vmem, size = 0x12000, scoped, tag = 'internal scratch']
  #allocation2 [shape = 'f32[1,4]{1,0:T(1,128)}', space=vmem, size = 0x200, scoped, tag = 'scratch operand']
  #allocation3 [shape = 'f32[1,4]{1,0:T(1,128)}', space=vmem, size = 0x200, scoped, tag = 'scratch operand']
  %s0 = inlined_call_operand.vmem [shape: f32[64,128], index: 0, kind: input, shape index: {}]
  %s1 = inlined_call_operand.vmem [shape: s32[64,1], index: 1, kind: input, shape index: {}]
  %s2 = inlined_call_operand.vmem [shape: f32[4,128], index: 2, kind: input, shape index: {}]
  %s3 = inlined_call_operand.hbm [shape: f32[1,1], index: 3, kind: output, shape index: {}]
  %s4 = sld [smem:[#allocation0]]
  $region53: #{tpu_custom_call.1} parent=0
    _
  %s6 = ssub.s32 1, %s4
  %s7 = scalar_select 0, %s6, %s4
  $region1: #{tpu_custom_call.1} parent=0
    #allocation4 [shape = 'u8[512]{0}', space=vmem, size = 0x400, scoped, tag = 'output window, operand 0, single buffered']
    #allocation5 [shape = 's32[2]{0}', space=sflag, size = 0x8, scoped, tag = 'scoped memory for tpu_custom_call.1']
    %8 = vsyncpa [#allocation5], 0
    loop: start=0, step=1, limit=6
    $region2: #{tpu_custom_call.1} parent=1 // loop_pre_header
      _
    $region3: #{tpu_custom_call.1} parent=1 // loop_header
      %s10 = sphi 0, %s14
      %p11 = scmp.ge.s32.totalorder %s10, 6
      %s20 = sphi 0, %s22
      %s23 = sphi 0, %s20
      %s24 = sphi 0, %s23
      %s40 = sphi 0, %s24
      %s46 = sphi 0, %s48
      %s49 = sphi 0, %s46
      %s50 = sphi 0, %s49
      %s66 = sphi 0, %s50
      %s70 = sphi 0, %s70
      %s72 = sphi 0, %s70
      %s73 = sphi 0, %s72
      %s87 = sphi 0, %s73
      %s91 = sphi 0, %s91
      %s93 = sphi 0, %s91
      %s94 = sphi 0, %s93
      %s108 = sphi 0, %s94
    $region4: #{tpu_custom_call.1} parent=1 // loop_header_branch
      %13 = sbr.rel (%p11) target = $region8
    $region5: #{tpu_custom_call.1} parent=1 // loop_body
      %s15 = ssub.s32 %s10, 1
      %s16 = ssub.s32 %s10, 2
      %s17 = sadd.s32 %s10, 1
      %s18 = ssub.s32 %s10, %s17
      %p19 = scmp.eq.s32.totalorder %s18, 0
      %s21 = sadd.s32 %s20, 1
      %s22 = scalar_select %p19, %s20, %s21
      %p25 = pneg %p19
      %p26 = scmp.eq.s32.totalorder %s10, 3
      %p27 = por %p25, %p26
      %p28 = scmp.ne.s32.totalorder %s20, %s23
      %p29 = scmp.eq.s32.totalorder %s10, 0
      %p30 = por %p28, %p29
      %p31 = scmp.ne.s32.totalorder %s20, %s23
      %p32 = scmp.eq.s32.totalorder %s15, 3
      %p33 = por %p31, %p32
      %p34 = scmp.ne.s32.totalorder %s23, %s24
      %p35 = scmp.eq.s32.totalorder %s15, 0
      %p36 = por %p34, %p35
      %p37 = scmp.ne.s32.totalorder %s23, %s24
      %p38 = scmp.eq.s32.totalorder %s16, 3
      %p39 = por %p37, %p38
      %p41 = scmp.ne.s32.totalorder %s24, %s40
      %p42 = scmp.eq.s32.totalorder %s16, 0
      %p43 = por %p41, %p42
      %s44 = ssub.s32 %s10, %s17
      %p45 = scmp.eq.s32.totalorder %s44, 0
      %s47 = sadd.s32 %s46, 1
      %s48 = scalar_select %p45, %s46, %s47
      %p51 = pneg %p45
      %p52 = scmp.eq.s32.totalorder %s10, 3
      %p53 = por %p51, %p52
      %p54 = scmp.ne.s32.totalorder %s46, %s49
      %p55 = scmp.eq.s32.totalorder %s10, 0
      %p56 = por %p54, %p55
      %p57 = scmp.ne.s32.totalorder %s46, %s49
      %p58 = scmp.eq.s32.totalorder %s15, 3
      %p59 = por %p57, %p58
      %p60 = scmp.ne.s32.totalorder %s49, %s50
      %p61 = scmp.eq.s32.totalorder %s15, 0
      %p62 = por %p60, %p61
      %p63 = scmp.ne.s32.totalorder %s49, %s50
      %p64 = scmp.eq.s32.totalorder %s16, 3
      %p65 = por %p63, %p64
      %p67 = scmp.ne.s32.totalorder %s50, %s66
      %p68 = scmp.eq.s32.totalorder %s16, 0
      %p69 = por %p67, %p68
      %s71 = sadd.s32 %s70, 1
      %p74 = scmp.eq.s32.totalorder %s10, 3
      %p75 = scmp.ne.s32.totalorder %s70, %s72
      %p76 = scmp.eq.s32.totalorder %s10, 0
      %p77 = por %p75, %p76
      %p78 = scmp.ne.s32.totalorder %s70, %s72
      %p79 = scmp.eq.s32.totalorder %s15, 3
      %p80 = por %p78, %p79
      %p81 = scmp.ne.s32.totalorder %s72, %s73
      %p82 = scmp.eq.s32.totalorder %s15, 0
      %p83 = por %p81, %p82
      %p84 = scmp.ne.s32.totalorder %s72, %s73
      %p85 = scmp.eq.s32.totalorder %s16, 3
      %p86 = por %p84, %p85
      %p88 = scmp.ne.s32.totalorder %s73, %s87
      %p89 = scmp.eq.s32.totalorder %s16, 0
      %p90 = por %p88, %p89
      %s92 = sadd.s32 %s91, 1
      %p95 = scmp.eq.s32.totalorder %s10, 3
      %p96 = scmp.ne.s32.totalorder %s91, %s93
      %p97 = scmp.eq.s32.totalorder %s10, 0
      %p98 = por %p96, %p97
      %p99 = scmp.ne.s32.totalorder %s91, %s93
      %p100 = scmp.eq.s32.totalorder %s15, 3
      %p101 = por %p99, %p100
      %p102 = scmp.ne.s32.totalorder %s93, %s94
      %p103 = scmp.eq.s32.totalorder %s15, 0
      %p104 = por %p102, %p103
      %p105 = scmp.ne.s32.totalorder %s93, %s94
      %p106 = scmp.eq.s32.totalorder %s16, 3
      %p107 = por %p105, %p106
      %p109 = scmp.ne.s32.totalorder %s94, %s108
      %p110 = scmp.eq.s32.totalorder %s16, 0
      %p111 = por %p109, %p110
      %p112 = scmp.le.s32.totalorder 1, %s10
      %p113 = scmp.lt.s32.totalorder %s10, 5
      %p114 = pnand %p112, %p113
      %p115 = pneg %p114
      // Predicated region
      $region9: #{tpu_custom_call.1} parent=5 // pred_check
        _
      $region10: #{tpu_custom_call.1} parent=5 // pred_check_branch
        %117 = sbr.rel (%p114) target = $region12
      $region11: #{tpu_custom_call.1} parent=5 // pred_region
        %s118 = ssub.s32 %s10, 1
        // Predicated region
        $region13: #{tpu_custom_call.1} parent=11 // pred_check
          %p119 = pneg %p83
        $region14: #{tpu_custom_call.1} parent=11 // pred_check_branch
          %121 = sbr.rel (%p119) target = $region16
        $region15: #{tpu_custom_call.1} parent=11 // pred_region
          _
        $region16: #{tpu_custom_call.1} parent=11 // pred_fallthru
          _
      $region12: #{tpu_custom_call.1} parent=5 // pred_fallthru
        _
      %p122 = scmp.lt.s32.totalorder %s10, 4
      // Predicated region
      $region17: #{tpu_custom_call.1} parent=5 // pred_check
        %p123 = pneg %p122
      $region18: #{tpu_custom_call.1} parent=5 // pred_check_branch
        %125 = sbr.rel (%p123) target = $region20
      $region19: #{tpu_custom_call.1} parent=5 // pred_region
        // Predicated region
        $region21: #{tpu_custom_call.1} parent=19 // pred_check
          %p126 = pneg %p30
        $region22: #{tpu_custom_call.1} parent=19 // pred_check_branch
          %128 = sbr.rel (%p126) target = $region24
        $region23: #{tpu_custom_call.1} parent=19 // pred_region
          %s129 = smul.u32 2, %s10
          %p130 = scmp.lt.s32.totalorder %s129, 7
          %s131 = scalar_select %p130, %s129, 7
          %s132 = smul.addr %s131, 8
          %s133 = scalar_lea.vmem %s0, %s132
          %s134 = smul.u32 2, %s10
        $region24: #{tpu_custom_call.1} parent=19 // pred_fallthru
          _
        // Predicated region
        $region25: #{tpu_custom_call.1} parent=19 // pred_check
          %p135 = pneg %p56
        $region26: #{tpu_custom_call.1} parent=19 // pred_check_branch
          %137 = sbr.rel (%p135) target = $region28
        $region27: #{tpu_custom_call.1} parent=19 // pred_region
          %s138 = smul.u32 2, %s10
          %p139 = scmp.lt.s32.totalorder %s138, 7
          %s140 = scalar_select %p139, %s138, 7
          %s141 = smul.addr %s140, 8
          %s142 = scalar_lea.vmem %s1, %s141
          %s143 = smul.u32 2, %s10
        $region28: #{tpu_custom_call.1} parent=19 // pred_fallthru
          _
      $region20: #{tpu_custom_call.1} parent=5 // pred_fallthru
        _
      %p144 = scmp.le.s32.totalorder 1, %s10
      %p145 = scmp.lt.s32.totalorder %s10, 5
      %p146 = pnand %p144, %p145
      %p147 = pneg %p146
      // Predicated region
      $region29: #{tpu_custom_call.1} parent=5 // pred_check
        _
      $region30: #{tpu_custom_call.1} parent=5 // pred_check_branch
        %149 = sbr.rel (%p146) target = $region32
      $region31: #{tpu_custom_call.1} parent=5 // pred_region
        %s150 = ssub.s32 %s10, 1
        %s151 = smul.u32 2, %s15
        %p152 = scmp.lt.s32.totalorder %s151, 7
        %s153 = scalar_select %p152, %s151, 7
        %s154 = smul.addr %s153, 8
        %s155 = scalar_lea.vmem %s0, %s154
        %p156 = pneg %p36
        %p157 = pneg %p33
        %s158 = smul.u32 2, %s15
        %p159 = scmp.lt.s32.totalorder %s158, 7
        %s160 = scalar_select %p159, %s158, 7
        %s161 = smul.addr %s160, 8
        %s162 = scalar_lea.vmem %s1, %s161
        %p163 = pneg %p62
        %p164 = pneg %p59
        %p165 = pneg %p83
        %p166 = pneg %p80
        %p167 = pneg %p104
        %p168 = pneg %p101
        %s169 = smul.u32 2, %s15
        %p170 = scmp.lt.s32.totalorder %s169, 7
        %s171 = scalar_select %p170, %s169, 7
        %s172 = smul.addr %s171, 8
        %s173 = scalar_lea.vmem %s0, %s172
        %s174 = smul.u32 2, %s15
        %s175 = smul.u32 2, %s15
        %p176 = scmp.lt.s32.totalorder %s175, 7
        %s177 = scalar_select %p176, %s175, 7
        %s178 = smul.addr %s177, 8
        %s179 = scalar_lea.vmem %s1, %s178
        %s180 = smul.u32 2, %s15
        %p181 = scmp.eq.s32.totalorder %s15, 0
        // Predicated region
        $region33: #{tpu_custom_call.1} parent=31 // pred_check
          %p182 = pneg %p181
        $region34: #{tpu_custom_call.1} parent=31 // pred_check_branch
          %184 = sbr.rel (%p182) target = $region36
        $region35: #{tpu_custom_call.1} parent=31 // pred_region
          %vm185 = vcmask 24576
          %186 = vst.msk [vmem:[#allocation2] sm:$0x1] %vm185, 0.0
          %187 = vst.msk [vmem:[#allocation3] sm:$0x1] %vm185, 0.0
        $region36: #{tpu_custom_call.1} parent=31 // pred_fallthru
          _
        %v188 = vld [vmem:[%s173] sm:$0xff]
        %v189 = vld [vmem:[%s173 + $0x8] sm:$0xff]
        %v190 = vld [vmem:[%s2] sm:$0xf]
        %v191 = vld [vmem:[%s179] sm:$0xff]
        %v192 = vld [vmem:[%s179 + $0x8] sm:$0xff]
        %v193 = vlaneseq
        %v194 = vand.u32 %v193, 127
        %195 = vset.pattern.permute.xlu0 0
        %196 = vperm.xlu0 %195, %v191
        %v197 = vpop.permute.xlu0 %196
        %198 = vset.pattern.permute.xlu0 0
        %199 = vperm.xlu0 %198, %v192
        %v200 = vpop.permute.xlu0 %199
        %vm201 = vcmp.eq.s32.totalorder %v197, %v194
        %vm202 = vcmp.eq.s32.totalorder %v200, %v194
        %v203 = vsel %vm201, 1, 0
        %v204 = vsel %vm202, 1, 0
        %v205 = vcvt.s32.f32 %v203
        %v206 = vcvt.s32.f32 %v204
        %vm207 = vcmask 31744
        %v209 = vsel %vm207, %v205, 0
        %v212 = vsel %vm207, %v206, 0
        %vm214 = vcmask 1043456
        %v216 = vsel %vm214, %v190, 0
        %218 = vmatprep.subr.mxu0 0.0
        %v219 = vand.u32 %v216, 4294901760
        %220 = vmatpush1.msra.mxu0 %v219
        %221 = vmatprep.subr.mxu0 0.0
        %222 = vmatpush1.msra.mxu0 0.0
        %223 = vmatprep.subr.mxu0 0.0
        %224 = vmatpush1.msra.mxu0 0.0
        %225 = vmatprep.subr.mxu0 0.0
        %226 = vmatpush1.msra.mxu0 0.0
        %227 = vmatprep.subr.mxu0 0.0
        %228 = vmatpush1.msra.mxu0 0.0
        %229 = vmatprep.subr.mxu0 0.0
        %230 = vmatpush1.msra.mxu0 0.0
        %231 = vmatprep.subr.mxu0 0.0
        %232 = vmatpush1.msra.mxu0 0.0
        %233 = vmatprep.subr.mxu0 0.0
        %234 = vmatpush1.msra.mxu0 0.0
        %235 = vmatprep.subr.mxu0 0.0
        %236 = vmatpush1.msra.mxu0 0.0
        %237 = vmatprep.subr.mxu0 0.0
        %238 = vmatpush1.msra.mxu0 0.0
        %239 = vmatprep.subr.mxu0 0.0
        %240 = vmatpush1.msra.mxu0 0.0
        %241 = vmatprep.subr.mxu0 0.0
        %242 = vmatpush1.msra.mxu0 0.0
        %243 = vmatprep.subr.mxu0 0.0
        %244 = vmatpush1.msra.mxu0 0.0
        %245 = vmatprep.subr.mxu0 0.0
        %246 = vmatpush1.msra.mxu0 0.0
        %247 = vmatprep.subr.mxu0 0.0
        %248 = vmatpush1.msra.mxu0 0.0
        %249 = vmatprep.subr.mxu0 0.0
        %250 = vmatpush1.msra.mxu0 0.0
        %251 = vmatprep.subr.mxu0 0.0
        %252 = vmatpush1.msra.mxu0 0.0
        %253 = vmatprep.subr.mxu0 0.0
        %254 = vmatpush1.msra.mxu0 0.0
        %255 = vmatprep.subr.mxu0 0.0
        %256 = vmatpush1.msra.mxu0 0.0
        %257 = vmatprep.subr.mxu0 0.0
        %258 = vmatpush1.msra.mxu0 0.0
        %259 = vmatprep.subr.mxu0 0.0
        %260 = vmatpush1.msra.mxu0 0.0
        %261 = vmatprep.subr.mxu0 0.0
        %262 = vmatpush1.msra.mxu0 0.0
        %263 = vmatprep.subr.mxu0 0.0
        %264 = vmatpush1.msra.mxu0 0.0
        %265 = vmatprep.subr.mxu0 0.0
        %266 = vmatpush1.msra.mxu0 0.0
        %267 = vmatprep.subr.mxu0 0.0
        %268 = vmatpush1.msra.mxu0 0.0
        %269 = vmatprep.subr.mxu0 0.0
        %270 = vmatpush1.msra.mxu0 0.0
        %271 = vmatprep.subr.mxu0 0.0
        %272 = vmatpush1.msra.mxu0 0.0
        %273 = vmatprep.subr.mxu0 0.0
        %274 = vmatpush1.msra.mxu0 0.0
        %275 = vmatprep.subr.mxu0 0.0
        %276 = vmatpush1.msra.mxu0 0.0
        %277 = vmatprep.subr.mxu0 0.0
        %278 = vmatpush1.msra.mxu0 0.0
        %279 = vmatprep.subr.mxu0 0.0
        %280 = vmatpush1.msra.mxu0 0.0
        %281 = vmatprep.subr.mxu0 0.0
        %282 = vmatpush1.msra.mxu0 0.0
        %283 = vmatprep.mubr.f32.mxu0 0.0
        %v284 = vand.u32 %v209, 4294901760
        %v285 = vsub.f32 %v209, %v284
        %v286 = vand.u32 %v285, 4294901760
        %v287 = vsub.f32 %v285, %v286
        %v288 = vand.u32 %v287, 4294901760
        %289 = vmatmul.mubr.f32.gmra.mrb[0].mxu0 %v288
        %v290 = vpop.f32.mrb[0].mxu0
        %v291 = vadd.f32 0.0, %v290
        %v292 = vpop.f32.mrb[0].mxu0
        %293 = vmatprep.mubr.f32.mxu0 0.0
        %v294 = vand.u32 %v212, 4294901760
        %v295 = vsub.f32 %v212, %v294
        %v296 = vand.u32 %v295, 4294901760
        %v297 = vsub.f32 %v295, %v296
        %v298 = vand.u32 %v297, 4294901760
        %299 = vmatmul.mubr.f32.gmra.mrb[0].mxu0 %v298
        %v300 = vpop.f32.mrb[0].mxu0
        %v301 = vadd.f32 0.0, %v300
        %v302 = vpop.f32.mrb[0].mxu0
        %303 = vdwg.mxu0
        %304 = vmatprep.subr.mxu0 0.0
        %v305 = vand.u32 %v216, 4294901760
        %v306 = vsub.f32 %v216, %v305
        %v307 = vand.u32 %v306, 4294901760
        %v308 = vsub.f32 %v306, %v307
        %v309 = vand.u32 %v308, 4294901760
        %310 = vmatpush1.msra.mxu0 %v309
        %311 = vmatprep.subr.mxu0 0.0
        %312 = vmatpush1.msra.mxu0 0.0
        %313 = vmatprep.subr.mxu0 0.0
        %314 = vmatpush1.msra.mxu0 0.0
        %315 = vmatprep.subr.mxu0 0.0
        %316 = vmatpush1.msra.mxu0 0.0
        %317 = vmatprep.subr.mxu0 0.0
        %318 = vmatpush1.msra.mxu0 0.0
        %319 = vmatprep.subr.mxu0 0.0
        %320 = vmatpush1.msra.mxu0 0.0
        %321 = vmatprep.subr.mxu0 0.0
        %322 = vmatpush1.msra.mxu0 0.0
        %323 = vmatprep.subr.mxu0 0.0
        %324 = vmatpush1.msra.mxu0 0.0
        %325 = vmatprep.subr.mxu0 0.0
        %326 = vmatpush1.msra.mxu0 0.0
        %327 = vmatprep.subr.mxu0 0.0
        %328 = vmatpush1.msra.mxu0 0.0
        %329 = vmatprep.subr.mxu0 0.0
        %330 = vmatpush1.msra.mxu0 0.0
        %331 = vmatprep.subr.mxu0 0.0
        %332 = vmatpush1.msra.mxu0 0.0
        %333 = vmatprep.subr.mxu0 0.0
        %334 = vmatpush1.msra.mxu0 0.0
        %335 = vmatprep.subr.mxu0 0.0
        %336 = vmatpush1.msra.mxu0 0.0
        %337 = vmatprep.subr.mxu0 0.0
        %338 = vmatpush1.msra.mxu0 0.0
        %339 = vmatprep.subr.mxu0 0.0
        %340 = vmatpush1.msra.mxu0 0.0
        %341 = vmatprep.subr.mxu0 0.0
        %342 = vmatpush1.msra.mxu0 0.0
        %343 = vmatprep.subr.mxu0 0.0
        %344 = vmatpush1.msra.mxu0 0.0
        %345 = vmatprep.subr.mxu0 0.0
        %346 = vmatpush1.msra.mxu0 0.0
        %347 = vmatprep.subr.mxu0 0.0
        %348 = vmatpush1.msra.mxu0 0.0
        %349 = vmatprep.subr.mxu0 0.0
        %350 = vmatpush1.msra.mxu0 0.0
        %351 = vmatprep.subr.mxu0 0.0
        %352 = vmatpush1.msra.mxu0 0.0
        %353 = vmatprep.subr.mxu0 0.0
        %354 = vmatpush1.msra.mxu0 0.0
        %355 = vmatprep.subr.mxu0 0.0
        %356 = vmatpush1.msra.mxu0 0.0
        %357 = vmatprep.subr.mxu0 0.0
        %358 = vmatpush1.msra.mxu0 0.0
        %359 = vmatprep.subr.mxu0 0.0
        %360 = vmatpush1.msra.mxu0 0.0
        %361 = vmatprep.subr.mxu0 0.0
        %362 = vmatpush1.msra.mxu0 0.0
        %363 = vmatprep.subr.mxu0 0.0
        %364 = vmatpush1.msra.mxu0 0.0
        %365 = vmatprep.subr.mxu0 0.0
        %366 = vmatpush1.msra.mxu0 0.0
        %367 = vmatprep.subr.mxu0 0.0
        %368 = vmatpush1.msra.mxu0 0.0
        %369 = vmatprep.subr.mxu0 0.0
        %370 = vmatpush1.msra.mxu0 0.0
        %371 = vmatprep.subr.mxu0 0.0
        %372 = vmatpush1.msra.mxu0 0.0
        %373 = vmatprep.mubr.f32.mxu0 0.0
        %v374 = vand.u32 %v209, 4294901760
        %375 = vmatmul.mubr.f32.gmra.mrb[0].mxu0 %v374
        %v376 = vpop.f32.mrb[0].mxu0
        %v377 = vadd.f32 %v291, %v376
        %v378 = vpop.f32.mrb[0].mxu0
        %379 = vmatprep.mubr.f32.mxu0 0.0
        %v380 = vand.u32 %v212, 4294901760
        %381 = vmatmul.mubr.f32.gmra.mrb[0].mxu0 %v380
        %v382 = vpop.f32.mrb[0].mxu0
        %v383 = vadd.f32 %v301, %v382
        %v384 = vpop.f32.mrb[0].mxu0
        %385 = vdwg.mxu0
        %386 = vmatprep.subr.mxu0 0.0
        %v387 = vand.u32 %v216, 4294901760
        %v388 = vsub.f32 %v216, %v387
        %389 = vmatpush1.msra.mxu0 %v388
        %390 = vmatprep.subr.mxu0 0.0
        %391 = vmatpush1.msra.mxu0 0.0
        %392 = vmatprep.subr.mxu0 0.0
        %393 = vmatpush1.msra.mxu0 0.0
        %394 = vmatprep.subr.mxu0 0.0
        %395 = vmatpush1.msra.mxu0 0.0
        %396 = vmatprep.subr.mxu0 0.0
        %397 = vmatpush1.msra.mxu0 0.0
        %398 = vmatprep.subr.mxu0 0.0
        %399 = vmatpush1.msra.mxu0 0.0
        %400 = vmatprep.subr.mxu0 0.0
        %401 = vmatpush1.msra.mxu0 0.0
        %402 = vmatprep.subr.mxu0 0.0
        %403 = vmatpush1.msra.mxu0 0.0
        %404 = vmatprep.subr.mxu0 0.0
        %405 = vmatpush1.msra.mxu0 0.0
        %406 = vmatprep.subr.mxu0 0.0
        %407 = vmatpush1.msra.mxu0 0.0
        %408 = vmatprep.subr.mxu0 0.0
        %409 = vmatpush1.msra.mxu0 0.0
        %410 = vmatprep.subr.mxu0 0.0
        %411 = vmatpush1.msra.mxu0 0.0
        %412 = vmatprep.subr.mxu0 0.0
        %413 = vmatpush1.msra.mxu0 0.0
        %414 = vmatprep.subr.mxu0 0.0
        %415 = vmatpush1.msra.mxu0 0.0
        %416 = vmatprep.subr.mxu0 0.0
        %417 = vmatpush1.msra.mxu0 0.0
        %418 = vmatprep.subr.mxu0 0.0
        %419 = vmatpush1.msra.mxu0 0.0
        %420 = vmatprep.subr.mxu0 0.0
        %421 = vmatpush1.msra.mxu0 0.0
        %422 = vmatprep.subr.mxu0 0.0
        %423 = vmatpush1.msra.mxu0 0.0
        %424 = vmatprep.subr.mxu0 0.0
        %425 = vmatpush1.msra.mxu0 0.0
        %426 = vmatprep.subr.mxu0 0.0
        %427 = vmatpush1.msra.mxu0 0.0
        %428 = vmatprep.subr.mxu0 0.0
        %429 = vmatpush1.msra.mxu0 0.0
        %430 = vmatprep.subr.mxu0 0.0
        %431 = vmatpush1.msra.mxu0 0.0
        %432 = vmatprep.subr.mxu0 0.0
        %433 = vmatpush1.msra.mxu0 0.0
        %434 = vmatprep.subr.mxu0 0.0
        %435 = vmatpush1.msra.mxu0 0.0
        %436 = vmatprep.subr.mxu0 0.0
        %437 = vmatpush1.msra.mxu0 0.0
        %438 = vmatprep.subr.mxu0 0.0
        %439 = vmatpush1.msra.mxu0 0.0
        %440 = vmatprep.subr.mxu0 0.0
        %441 = vmatpush1.msra.mxu0 0.0
        %442 = vmatprep.subr.mxu0 0.0
        %443 = vmatpush1.msra.mxu0 0.0
        %444 = vmatprep.subr.mxu0 0.0
        %445 = vmatpush1.msra.mxu0 0.0
        %446 = vmatprep.subr.mxu0 0.0
        %447 = vmatpush1.msra.mxu0 0.0
        %448 = vmatprep.subr.mxu0 0.0
        %449 = vmatpush1.msra.mxu0 0.0
        %450 = vmatprep.subr.mxu0 0.0
        %451 = vmatpush1.msra.mxu0 0.0
        %452 = vmatprep.mubr.f32.mxu0 0.0
        %v453 = vand.u32 %v209, 4294901760
        %v454 = vsub.f32 %v209, %v453
        %455 = vmatmul.mubr.f32.gmra.mrb[0].mxu0 %v454
        %v456 = vpop.f32.mrb[0].mxu0
        %v457 = vadd.f32 %v377, %v456
        %v458 = vpop.f32.mrb[0].mxu0
        %459 = vmatprep.mubr.f32.mxu0 0.0
        %v460 = vand.u32 %v212, 4294901760
        %v461 = vsub.f32 %v212, %v460
        %462 = vmatmul.mubr.f32.gmra.mrb[0].mxu0 %v461
        %v463 = vpop.f32.mrb[0].mxu0
        %v464 = vadd.f32 %v383, %v463
        %v465 = vpop.f32.mrb[0].mxu0
        %466 = vdwg.mxu0
        %467 = vmatprep.subr.mxu0 0.0
        %v468 = vand.u32 %v216, 4294901760
        %469 = vmatpush1.msra.mxu0 %v468
        %470 = vmatprep.subr.mxu0 0.0
        %471 = vmatpush1.msra.mxu0 0.0
        %472 = vmatprep.subr.mxu0 0.0
        %473 = vmatpush1.msra.mxu0 0.0
        %474 = vmatprep.subr.mxu0 0.0
        %475 = vmatpush1.msra.mxu0 0.0
        %476 = vmatprep.subr.mxu0 0.0
        %477 = vmatpush1.msra.mxu0 0.0
        %478 = vmatprep.subr.mxu0 0.0
        %479 = vmatpush1.msra.mxu0 0.0
        %480 = vmatprep.subr.mxu0 0.0
        %481 = vmatpush1.msra.mxu0 0.0
        %482 = vmatprep.subr.mxu0 0.0
        %483 = vmatpush1.msra.mxu0 0.0
        %484 = vmatprep.subr.mxu0 0.0
        %485 = vmatpush1.msra.mxu0 0.0
        %486 = vmatprep.subr.mxu0 0.0
        %487 = vmatpush1.msra.mxu0 0.0
        %488 = vmatprep.subr.mxu0 0.0
        %489 = vmatpush1.msra.mxu0 0.0
        %490 = vmatprep.subr.mxu0 0.0
        %491 = vmatpush1.msra.mxu0 0.0
        %492 = vmatprep.subr.mxu0 0.0
        %493 = vmatpush1.msra.mxu0 0.0
        %494 = vmatprep.subr.mxu0 0.0
        %495 = vmatpush1.msra.mxu0 0.0
        %496 = vmatprep.subr.mxu0 0.0
        %497 = vmatpush1.msra.mxu0 0.0
        %498 = vmatprep.subr.mxu0 0.0
        %499 = vmatpush1.msra.mxu0 0.0
        %500 = vmatprep.subr.mxu0 0.0
        %501 = vmatpush1.msra.mxu0 0.0
        %502 = vmatprep.subr.mxu0 0.0
        %503 = vmatpush1.msra.mxu0 0.0
        %504 = vmatprep.subr.mxu0 0.0
        %505 = vmatpush1.msra.mxu0 0.0
        %506 = vmatprep.subr.mxu0 0.0
        %507 = vmatpush1.msra.mxu0 0.0
        %508 = vmatprep.subr.mxu0 0.0
        %509 = vmatpush1.msra.mxu0 0.0
        %510 = vmatprep.subr.mxu0 0.0
        %511 = vmatpush1.msra.mxu0 0.0
        %512 = vmatprep.subr.mxu0 0.0
        %513 = vmatpush1.msra.mxu0 0.0
        %514 = vmatprep.subr.mxu0 0.0
        %515 = vmatpush1.msra.mxu0 0.0
        %516 = vmatprep.subr.mxu0 0.0
        %517 = vmatpush1.msra.mxu0 0.0
        %518 = vmatprep.subr.mxu0 0.0
        %519 = vmatpush1.msra.mxu0 0.0
        %520 = vmatprep.subr.mxu0 0.0
        %521 = vmatpush1.msra.mxu0 0.0
        %522 = vmatprep.subr.mxu0 0.0
        %523 = vmatpush1.msra.mxu0 0.0
        %524 = vmatprep.subr.mxu0 0.0
        %525 = vmatpush1.msra.mxu0 0.0
        %526 = vmatprep.subr.mxu0 0.0
        %527 = vmatpush1.msra.mxu0 0.0
        %528 = vmatprep.subr.mxu0 0.0
        %529 = vmatpush1.msra.mxu0 0.0
        %530 = vmatprep.subr.mxu0 0.0
        %531 = vmatpush1.msra.mxu0 0.0
        %532 = vmatprep.mubr.f32.mxu0 0.0
        %v533 = vand.u32 %v209, 4294901760
        %v534 = vsub.f32 %v209, %v533
        %v535 = vand.u32 %v534, 4294901760
        %536 = vmatmul.mubr.f32.gmra.mrb[0].mxu0 %v535
        %v537 = vpop.f32.mrb[0].mxu0
        %v538 = vadd.f32 %v457, %v537
        %v539 = vpop.f32.mrb[0].mxu0
        %540 = vmatprep.mubr.f32.mxu0 0.0
        %v541 = vand.u32 %v212, 4294901760
        %v542 = vsub.f32 %v212, %v541
        %v543 = vand.u32 %v542, 4294901760
        %544 = vmatmul.mubr.f32.gmra.mrb[0].mxu0 %v543
        %v545 = vpop.f32.mrb[0].mxu0
        %v546 = vadd.f32 %v464, %v545
        %v547 = vpop.f32.mrb[0].mxu0
        %548 = vdwg.mxu0
        %549 = vmatprep.subr.mxu0 0.0
        %v550 = vand.u32 %v216, 4294901760
        %v551 = vsub.f32 %v216, %v550
        %v552 = vand.u32 %v551, 4294901760
        %553 = vmatpush1.msra.mxu0 %v552
        %554 = vmatprep.subr.mxu0 0.0
        %555 = vmatpush1.msra.mxu0 0.0
        %556 = vmatprep.subr.mxu0 0.0
        %557 = vmatpush1.msra.mxu0 0.0
        %558 = vmatprep.subr.mxu0 0.0
        %559 = vmatpush1.msra.mxu0 0.0
        %560 = vmatprep.subr.mxu0 0.0
        %561 = vmatpush1.msra.mxu0 0.0
        %562 = vmatprep.subr.mxu0 0.0
        %563 = vmatpush1.msra.mxu0 0.0
        %564 = vmatprep.subr.mxu0 0.0
        %565 = vmatpush1.msra.mxu0 0.0
        %566 = vmatprep.subr.mxu0 0.0
        %567 = vmatpush1.msra.mxu0 0.0
        %568 = vmatprep.subr.mxu0 0.0
        %569 = vmatpush1.msra.mxu0 0.0
        %570 = vmatprep.subr.mxu0 0.0
        %571 = vmatpush1.msra.mxu0 0.0
        %572 = vmatprep.subr.mxu0 0.0
        %573 = vmatpush1.msra.mxu0 0.0
        %574 = vmatprep.subr.mxu0 0.0
        %575 = vmatpush1.msra.mxu0 0.0
        %576 = vmatprep.subr.mxu0 0.0
        %577 = vmatpush1.msra.mxu0 0.0
        %578 = vmatprep.subr.mxu0 0.0
        %579 = vmatpush1.msra.mxu0 0.0
        %580 = vmatprep.subr.mxu0 0.0
        %581 = vmatpush1.msra.mxu0 0.0
        %582 = vmatprep.subr.mxu0 0.0
        %583 = vmatpush1.msra.mxu0 0.0
        %584 = vmatprep.subr.mxu0 0.0
        %585 = vmatpush1.msra.mxu0 0.0
        %586 = vmatprep.subr.mxu0 0.0
        %587 = vmatpush1.msra.mxu0 0.0
        %588 = vmatprep.subr.mxu0 0.0
        %589 = vmatpush1.msra.mxu0 0.0
        %590 = vmatprep.subr.mxu0 0.0
        %591 = vmatpush1.msra.mxu0 0.0
        %592 = vmatprep.subr.mxu0 0.0
        %593 = vmatpush1.msra.mxu0 0.0
        %594 = vmatprep.subr.mxu0 0.0
        %595 = vmatpush1.msra.mxu0 0.0
        %596 = vmatprep.subr.mxu0 0.0
        %597 = vmatpush1.msra.mxu0 0.0
        %598 = vmatprep.subr.mxu0 0.0
        %599 = vmatpush1.msra.mxu0 0.0
        %600 = vmatprep.subr.mxu0 0.0
        %601 = vmatpush1.msra.mxu0 0.0
        %602 = vmatprep.subr.mxu0 0.0
        %603 = vmatpush1.msra.mxu0 0.0
        %604 = vmatprep.subr.mxu0 0.0
        %605 = vmatpush1.msra.mxu0 0.0
        %606 = vmatprep.subr.mxu0 0.0
        %607 = vmatpush1.msra.mxu0 0.0
        %608 = vmatprep.subr.mxu0 0.0
        %609 = vmatpush1.msra.mxu0 0.0
        %610 = vmatprep.subr.mxu0 0.0
        %611 = vmatpush1.msra.mxu0 0.0
        %612 = vmatprep.subr.mxu0 0.0
        %613 = vmatpush1.msra.mxu0 0.0
        %614 = vmatprep.subr.mxu0 0.0
        %615 = vmatpush1.msra.mxu0 0.0
        %616 = vmatprep.mubr.f32.mxu0 0.0
        %v617 = vand.u32 %v209, 4294901760
        %618 = vmatmul.mubr.f32.gmra.mrb[0].mxu0 %v617
        %v619 = vpop.f32.mrb[0].mxu0
        %v620 = vadd.f32 %v538, %v619
        %v621 = vpop.f32.mrb[0].mxu0
        %622 = vmatprep.mubr.f32.mxu0 0.0
        %v623 = vand.u32 %v212, 4294901760
        %624 = vmatmul.mubr.f32.gmra.mrb[0].mxu0 %v623
        %v625 = vpop.f32.mrb[0].mxu0
        %v626 = vadd.f32 %v546, %v625
        %v627 = vpop.f32.mrb[0].mxu0
        %628 = vdwg.mxu0
        %629 = vmatprep.subr.mxu0 0.0
        %v630 = vand.u32 %v216, 4294901760
        %631 = vmatpush1.msra.mxu0 %v630
        %632 = vmatprep.subr.mxu0 0.0
        %633 = vmatpush1.msra.mxu0 0.0
        %634 = vmatprep.subr.mxu0 0.0
        %635 = vmatpush1.msra.mxu0 0.0
        %636 = vmatprep.subr.mxu0 0.0
        %637 = vmatpush1.msra.mxu0 0.0
        %638 = vmatprep.subr.mxu0 0.0
        %639 = vmatpush1.msra.mxu0 0.0
        %640 = vmatprep.subr.mxu0 0.0
        %641 = vmatpush1.msra.mxu0 0.0
        %642 = vmatprep.subr.mxu0 0.0
        %643 = vmatpush1.msra.mxu0 0.0
        %644 = vmatprep.subr.mxu0 0.0
        %645 = vmatpush1.msra.mxu0 0.0
        %646 = vmatprep.subr.mxu0 0.0
        %647 = vmatpush1.msra.mxu0 0.0
        %648 = vmatprep.subr.mxu0 0.0
        %649 = vmatpush1.msra.mxu0 0.0
        %650 = vmatprep.subr.mxu0 0.0
        %651 = vmatpush1.msra.mxu0 0.0
        %652 = vmatprep.subr.mxu0 0.0
        %653 = vmatpush1.msra.mxu0 0.0
        %654 = vmatprep.subr.mxu0 0.0
        %655 = vmatpush1.msra.mxu0 0.0
        %656 = vmatprep.subr.mxu0 0.0
        %657 = vmatpush1.msra.mxu0 0.0
        %658 = vmatprep.subr.mxu0 0.0
        %659 = vmatpush1.msra.mxu0 0.0
        %660 = vmatprep.subr.mxu0 0.0
        %661 = vmatpush1.msra.mxu0 0.0
        %662 = vmatprep.subr.mxu0 0.0
        %663 = vmatpush1.msra.mxu0 0.0
        %664 = vmatprep.subr.mxu0 0.0
        %665 = vmatpush1.msra.mxu0 0.0
        %666 = vmatprep.subr.mxu0 0.0
        %667 = vmatpush1.msra.mxu0 0.0
        %668 = vmatprep.subr.mxu0 0.0
        %669 = vmatpush1.msra.mxu0 0.0
        %670 = vmatprep.subr.mxu0 0.0
        %671 = vmatpush1.msra.mxu0 0.0
        %672 = vmatprep.subr.mxu0 0.0
        %673 = vmatpush1.msra.mxu0 0.0
        %674 = vmatprep.subr.mxu0 0.0
        %675 = vmatpush1.msra.mxu0 0.0
        %676 = vmatprep.subr.mxu0 0.0
        %677 = vmatpush1.msra.mxu0 0.0
        %678 = vmatprep.subr.mxu0 0.0
        %679 = vmatpush1.msra.mxu0 0.0
        %680 = vmatprep.subr.mxu0 0.0
        %681 = vmatpush1.msra.mxu0 0.0
        %682 = vmatprep.subr.mxu0 0.0
        %683 = vmatpush1.msra.mxu0 0.0
        %684 = vmatprep.subr.mxu0 0.0
        %685 = vmatpush1.msra.mxu0 0.0
        %686 = vmatprep.subr.mxu0 0.0
        %687 = vmatpush1.msra.mxu0 0.0
        %688 = vmatprep.subr.mxu0 0.0
        %689 = vmatpush1.msra.mxu0 0.0
        %690 = vmatprep.subr.mxu0 0.0
        %691 = vmatpush1.msra.mxu0 0.0
        %692 = vmatprep.subr.mxu0 0.0
        %693 = vmatpush1.msra.mxu0 0.0
        %694 = vmatprep.mubr.f32.mxu0 0.0
        %v695 = vand.u32 %v209, 4294901760
        %696 = vmatmul.mubr.f32.gmra.mrb[0].mxu0 %v695
        %v697 = vpop.f32.mrb[0].mxu0
        %v698 = vadd.f32 %v620, %v697
        %v699 = vpop.f32.mrb[0].mxu0
        %700 = vmatprep.mubr.f32.mxu0 0.0
        %v701 = vand.u32 %v212, 4294901760
        %702 = vmatmul.mubr.f32.gmra.mrb[0].mxu0 %v701
        %v703 = vpop.f32.mrb[0].mxu0
        %v704 = vadd.f32 %v626, %v703
        %v705 = vpop.f32.mrb[0].mxu0
        %706 = vdwg.mxu0
        %v707 = vmul.f32 %v188, %v698
        %v708 = vmul.f32 %v189, %v704
        %709 = vadd.xlane.f32.xlu0 %v707
        %v710 = vpop.xlane.xlu0 %709
        %711 = vadd.xlane.f32.xlu0 %v708
        %v712 = vpop.xlane.xlu0 %711
        %v713 = vmul.f32 %v188, %v188
        %v714 = vmul.f32 %v189, %v189
        %715 = vadd.xlane.f32.xlu0 %v713
        %v716 = vpop.xlane.xlu0 %715
        %717 = vadd.xlane.f32.xlu0 %v714
        %v718 = vpop.xlane.xlu0 %717
        %v719 = vmul.f32 %v698, %v698
        %v720 = vmul.f32 %v704, %v704
        %721 = vadd.xlane.f32.xlu0 %v719
        %v722 = vpop.xlane.xlu0 %721
        %723 = vadd.xlane.f32.xlu0 %v720
        %v724 = vpop.xlane.xlu0 %723
        %v725 = vmul.f32 %v716, %v722
        %v726 = vmul.f32 %v718, %v724
        %v727 = vmax.f32 %v725, 1e-16
        %v728 = vmax.f32 %v726, 1e-16
        %v729 = vrsqrt.pop %v727
        %v730 = vrsqrt.pop %v728
        %v731 = vmul.f32 %v710, %v729
        %v732 = vmul.f32 %v712, %v730
        %v733 = vmul.f32 %v731, 14.285714
        %v734 = vmul.f32 %v732, 14.285714
        %v735 = vmul.f32 %v733, 1.442695
        %v736 = vpow.pop %v735
        %v737 = vmul.f32 %v734, 1.442695
        %v738 = vpow.pop %v737
        %v739 = vld [vmem:[#allocation2] sm:$0x1]
        %v740 = vmul.f32 %v205, %v736
        %v741 = vmul.f32 %v206, %v738
        %v742 = vsel %vm207, %v740, 0.0
        %v743 = vsel %vm207, %v741, 0.0
        %v744 = vadd.f32 %v742, %v743
        %v745 = vrot.slane %v744, 4
        %v746 = vadd.f32 %v744, %v745
        %v747 = vrot.slane %v746, 2
        %v748 = vadd.f32 %v746, %v747
        %v749 = vrot.slane %v748, 1
        %v750 = vadd.f32 %v748, %v749
        %v751 = vadd.f32 %v739, %v750
        %vm752 = vcmask 24576
        %753 = vst.msk [vmem:[#allocation2] sm:$0x1] %vm752, %v751
        %v754 = vld [vmem:[#allocation3] sm:$0x1]
        %v755 = vsel %vm207, %v205, 0.0
        %v756 = vsel %vm207, %v206, 0.0
        %v757 = vadd.f32 %v755, %v756
        %v758 = vrot.slane %v757, 4
        %v759 = vadd.f32 %v757, %v758
        %v760 = vrot.slane %v759, 2
        %v761 = vadd.f32 %v759, %v760
        %v762 = vrot.slane %v761, 1
        %v763 = vadd.f32 %v761, %v762
        %v764 = vadd.f32 %v754, %v763
        %765 = vst.msk [vmem:[#allocation3] sm:$0x1] %vm752, %v764
        %p766 = scmp.eq.s32.totalorder %s15, 3
        // Predicated region
        $region37: #{tpu_custom_call.1} parent=31 // pred_check
          %p767 = pneg %p766
        $region38: #{tpu_custom_call.1} parent=31 // pred_check_branch
          %769 = sbr.rel (%p767) target = $region40
        $region39: #{tpu_custom_call.1} parent=31 // pred_region
          %v770 = vld [vmem:[#allocation2] sm:$0x1]
          %v771 = vld [vmem:[#allocation3] sm:$0x1]
          %v772 = vsel %vm752, %v770, 0.0
          %773 = vadd.xlane.f32.xlu0 %v772
          %v774 = vpop.xlane.xlu0 %773
          %v775 = vrot.slane %v774, 4
          %v776 = vadd.f32 %v774, %v775
          %v777 = vrot.slane %v776, 2
          %v778 = vadd.f32 %v776, %v777
          %v779 = vrot.slane %v778, 1
          %v780 = vadd.f32 %v778, %v779
          %s781 = vtos %v780
          %vm782 = vcmp.gt.f32.partialorder %v771, 0.0
          %v783 = vstv %s781
          %v784 = vsub.f32 %v783, %v770
          %v785 = vlog2.pop %v784
          %v786 = vmul.f32 %v785, 0.6931472
          %v787 = vlog2.pop %v770
          %v788 = vmul.f32 %v787, 0.6931472
          %v789 = vsub.f32 %v786, %v788
          %v790 = vsel %vm782, %v789, 0.0
          %v791 = vmul.f32 %v771, %v790
          %v792 = vsel %vm752, %v791, 0.0
          %793 = vadd.xlane.f32.xlu0 %v792
          %v794 = vpop.xlane.xlu0 %793
          %v795 = vrot.slane %v794, 4
          %v796 = vadd.f32 %v794, %v795
          %v797 = vrot.slane %v796, 2
          %v798 = vadd.f32 %v796, %v797
          %v799 = vrot.slane %v798, 1
          %v800 = vadd.f32 %v798, %v799
          %s801 = vtos %v800
          %s802 = smul.f32 %s801, 0.015625
          %v803 = vstv %s802
          %vm804 = vcmask 0
          %805 = vst.msk [vmem:[#allocation4] sm:$0x1] %vm804, %v803
        $region40: #{tpu_custom_call.1} parent=31 // pred_fallthru
          _
        // Predicated region
        $region41: #{tpu_custom_call.1} parent=31 // pred_check
          %p806 = pneg %p101
        $region42: #{tpu_custom_call.1} parent=31 // pred_check_branch
          %808 = sbr.rel (%p806) target = $region44
        $region43: #{tpu_custom_call.1} parent=31 // pred_region
          %s810 = ssub.s32 16, 16
          %811 = vsyncadd [#allocation5], %s810
          %s813 = sshll.u32 [#allocation4], 4
          %s814 = int_to_ptr.vmem [resolvable:$true] %s813
          %816 = dma.vmem_to_hbm [thread:$0]  %s814, 16, %s3, [#allocation5]
        $region44: #{tpu_custom_call.1} parent=31 // pred_fallthru
          _
        // Predicated region
        $region45: #{tpu_custom_call.1} parent=31 // pred_check
          %p817 = pneg %p101
        $region46: #{tpu_custom_call.1} parent=31 // pred_check_branch
          %819 = sbr.rel (%p817) target = $region48
        $region47: #{tpu_custom_call.1} parent=31 // pred_region
          %820 = dma.done [#allocation5], 16
        $region48: #{tpu_custom_call.1} parent=31 // pred_fallthru
          _
      $region32: #{tpu_custom_call.1} parent=5 // pred_fallthru
        _
      %p821 = scmp.le.s32.totalorder 2, %s10
      // Predicated region
      $region49: #{tpu_custom_call.1} parent=5 // pred_check
        %p822 = pneg %p821
      $region50: #{tpu_custom_call.1} parent=5 // pred_check_branch
        %824 = sbr.rel (%p822) target = $region52
      $region51: #{tpu_custom_call.1} parent=5 // pred_region
        %s825 = ssub.s32 %s10, 2
      $region52: #{tpu_custom_call.1} parent=5 // pred_fallthru
        _
    $region6: #{tpu_custom_call.1} parent=1 // loop_footer
      %s14 = sadd.s32 1, %s10
    $region7: #{tpu_custom_call.1} parent=1 // loop_footer_branch
      %9 = sbr.rel target = $region3
    $region8: #{tpu_custom_call.1} parent=1 // loop_exit
      _
    %826 = vsyncpa [#allocation5], 1
    %s827 = scalar_lea.sflag [#allocation5], 1
    %828 = vsyncpa %s827, 1

</llo_original>
